<compile_context>
chip_gen: v6e
topology: v6e:2x2x1
jax: 0.10.0
libtpu: 0.0.40
codegen_flags: <defaults>
</compile_context>

<pallas_src>
import functools

import jax
import jax.numpy as jnp
from jax.experimental import pallas as pl
from jax.experimental.pallas import tpu as pltpu

_LANE = 128
_SUBLANE = 8
_MAX_BATCH_TILE = 512       # vreg-pressure guard: >512 rows of f32 intermediates spill
_MIN_ROWS_PER_CORE = 64     # split single-tile batches >=128 rows so 2 TCs get work


def _round_up(n, m):
    return -(-n // m) * m


def _nbytes(a):
    return int(a.size) * jnp.dtype(a.dtype).itemsize


def _mlp_mse_kernel(x_ref, y_ref,
                    w0_ref, b0_ref,
                    w1_ref, b1_ref,
                    w2_ref, b2_ref,
                    wo_ref, bo_ref,
                    sse_ref,
                    *, batch_tile, valid_batch, needs_mask):
    """One batch tile: full MLP forward + this tile's partial sum of squared errors.

    MXU operands are bf16 (f32 accumulation via preferred_element_type); all
    elementwise math is f32.  Only the batch (sublane) axis is reduced here;
    the lane reduction is finished in the tiny JAX epilogue.  Each grid step
    writes its own lane-dense (8,128) partial block, so steps are independent
    ("parallel" dimension semantics) and no accumulator init/finalize exists.
    """
    out_dim = y_ref.shape[-1]

    x = x_ref[...]                                                     # bf16
    # inputlayer: Linear + ReLU
    h = jnp.dot(x, w0_ref[...], preferred_element_type=jnp.float32) + b0_ref[...]
    h = jnp.maximum(h, 0.0)
    # hidden layer 1
    h = jnp.dot(h.astype(jnp.bfloat16), w1_ref[...],
                preferred_element_type=jnp.float32) + b1_ref[...]
    h = jnp.maximum(h, 0.0)
    # hidden layer 2
    h = jnp.dot(h.astype(jnp.bfloat16), w2_ref[...],
                preferred_element_type=jnp.float32) + b2_ref[...]
    h = jnp.maximum(h, 0.0)
    # outputlayer: Linear, no activation
    out = jnp.dot(h.astype(jnp.bfloat16), wo_ref[...],
                  preferred_element_type=jnp.float32) + bo_ref[...]

    diff = out - y_ref[...]                                            # f32
    if needs_mask:
        # zero out padded batch rows (static flag; compiled away when no padding)
        i = pl.program_id(0)
        row = jax.lax.broadcasted_iota(jnp.int32, diff.shape, 0) + i * batch_tile
        diff = jnp.where(row < valid_batch, diff, 0.0)

    sq = diff * diff
    if out_dim <= _LANE:
        # Collapse only the batch/sublane axis in-kernel (VALU adds); lane
        # reduction happens in the JAX epilogue.
        lane_partial = jnp.sum(sq, axis=0, keepdims=True)              # (1, out_dim)
        if out_dim < _LANE:
            lane_partial = jnp.concatenate(
                [lane_partial,
                 jnp.zeros((1, _LANE - out_dim), jnp.float32)], axis=-1)
        # Replicate across sublanes -> single unmasked full-vreg store.
        # Block sum == _SUBLANE * tile_SSE (divided out exactly in the epilogue).
        sse_ref[...] = jnp.broadcast_to(lane_partial, (_SUBLANE, _LANE))
    else:
        # Rare wide-output fallback: scalar reduce + splat.
        # Block sum == _SUBLANE * _LANE * tile_SSE.
        sse = jnp.sum(sq)
        sse_ref[...] = jnp.full((_SUBLANE, _LANE), sse, dtype=jnp.float32)


def mlp_mse_loss(x, y, params, *, batch_tile=512):
    """params = (w0, b0, w1, b1, w2, b2, wo, bo); weights [in, out], biases [1, out]."""
    y = y.astype(jnp.float32)
    B, in_dim = x.shape
    out_dim = y.shape[1]
    w0, b0, w1, b1, w2, b2, wo, bo = params

    # bf16 MXU operands (halves x/weight DMA bytes, avoids multi-pass f32 MXU
    # emulation); biases, accumulation and loss math stay f32.
    x = x.astype(jnp.bfloat16)
    w0, w1, w2, wo = (w.astype(jnp.bfloat16) for w in (w0, w1, w2, wo))
    b0, b1, b2, bo = (b.astype(jnp.float32) for b in (b0, b1, b2, bo))

    # --- batch tiling -------------------------------------------------------
    rounded_b = _round_up(B, _SUBLANE)
    max_tile = max(_SUBLANE, _round_up(min(batch_tile, _MAX_BATCH_TILE), _SUBLANE))
    num_tiles = max(1, -(-rounded_b // max_tile))
    if num_tiles == 1 and rounded_b >= 2 * _MIN_ROWS_PER_CORE:
        # v7x has 2 TensorCores: don't collapse mid/large batches to grid=(1,).
        num_tiles = 2
    tile = _round_up(-(-rounded_b // num_tiles), _SUBLANE)   # balanced, sublane-aligned
    padded_b = num_tiles * tile
    needs_mask = padded_b != B
    if padded_b != B:
        x = jnp.pad(x, ((0, padded_b - B), (0, 0)))
        y = jnp.pad(y, ((0, padded_b - B), (0, 0)))

    # --- resident weight specs + VMEM budget --------------------------------
    resident = (w0, b0, w1, b1, w2, b2, wo, bo)
    resident_bytes = sum(_nbytes(a) for a in resident)
    # Never-changing weight blocks are double-buffered by default; single-buffer
    # them once they're large enough to pressure v7x's 64 MiB VMEM.  (At the
    # 64-wide demo dims this path is not taken.)
    single_buffer_weights = resident_bytes > (8 * 1024 * 1024)

    def full_spec(arr):
        index_map = lambda i, _nd=arr.ndim: (0,) * _nd
        if single_buffer_weights:
            return pl.BlockSpec(arr.shape, index_map, pipeline_mode=pl.Buffered(1))
        return pl.BlockSpec(arr.shape, index_map)

    streamed_bytes = 2 * (tile * in_dim * 2        # x tile (bf16), double-buffered
                          + tile * out_dim * 4     # y tile (f32)
                          + _SUBLANE * _LANE * 4)  # partial-SSE output block
    weight_copies = 1 if single_buffer_weights else 2
    vmem_limit = int(min(
        max(4 * (weight_copies * resident_bytes + streamed_bytes), 8 * 1024 * 1024),
        64 * 1024 * 1024))                          # stay within v7x's 64 MiB VMEM

    kernel = functools.partial(
        _mlp_mse_kernel, batch_tile=tile, valid_batch=B, needs_mask=needs_mask)

    partial_sse = pl.pallas_call(
        kernel,
        out_shape=jax.ShapeDtypeStruct((num_tiles * _SUBLANE, _LANE), jnp.float32),
        grid=(num_tiles,),
        in_specs=[
            pl.BlockSpec((tile, in_dim), lambda i: (i, 0)),   # x
            pl.BlockSpec((tile, out_dim), lambda i: (i, 0)),  # y
            full_spec(w0), full_spec(b0),
            full_spec(w1), full_spec(b1),
            full_spec(w2), full_spec(b2),
            full_spec(wo), full_spec(bo),
        ],
        out_specs=pl.BlockSpec((_SUBLANE, _LANE), lambda i: (i, 0)),
        compiler_params=pltpu.CompilerParams(
            dimension_semantics=("parallel",),      # independent batch tiles
            vmem_limit_bytes=vmem_limit,
        ),
    )(x, y, w0, b0, w1, b1, w2, b2, wo, bo)

    # Each tile's block sums to block_divisor * tile_SSE (sublane replication /
    # splat); finish the lane reduction + mean in plain JAX (tiny, exact /2^k).
    block_divisor = _SUBLANE if out_dim <= _LANE else _SUBLANE * _LANE
    return jnp.sum(partial_sse) / jnp.float32(block_divisor * B * out_dim)


def init_params(key, input_dim, hidden_dims, output_dim):
    """Deterministic synthetic parameter init (weights stored as [in, out], f32)."""
    dims = [input_dim] + list(hidden_dims) + [output_dim]
    params = []
    for i in range(len(dims) - 1):
        key, kw, kb = jax.random.split(key, 3)
        scale = 1.0 / jnp.sqrt(dims[i])
        w = jax.random.uniform(kw, (dims[i], dims[i + 1]), jnp.float32, -scale, scale)
        b = jax.random.uniform(kb, (1, dims[i + 1]), jnp.float32, -scale, scale)
        params.extend([w, b])
    return tuple(params)


def reference_loss_f32(x, y, params):
    """Pure-f32 plain-JAX reference (PyTorch semantics)."""
    w0, b0, w1, b1, w2, b2, wo, bo = params
    h = jnp.maximum(x @ w0 + b0, 0.0)
    h = jnp.maximum(h @ w1 + b1, 0.0)
    h = jnp.maximum(h @ w2 + b2, 0.0)
    out = h @ wo + bo
    return jnp.mean((out - y) ** 2)


def reference_loss_bf16(x, y, params):
    """Plain-JAX reference with the same bf16-operand / f32-accumulate matmuls."""
    w0, b0, w1, b1, w2, b2, wo, bo = params
    bf = lambda a: a.astype(jnp.bfloat16)
    h = jnp.maximum(jnp.dot(bf(x), bf(w0), preferred_element_type=jnp.float32) + b0, 0.0)
    h = jnp.maximum(jnp.dot(bf(h), bf(w1), preferred_element_type=jnp.float32) + b1, 0.0)
    h = jnp.maximum(jnp.dot(bf(h), bf(w2), preferred_element_type=jnp.float32) + b2, 0.0)
    out = jnp.dot(bf(h), bf(wo), preferred_element_type=jnp.float32) + bo
    return jnp.mean((out - y) ** 2)


if __name__ == "__main__":
    # FLAGS analog: input_dim=32, hidden_dims=[64, 64, 64], output_dim=16
    INPUT_DIM, OUTPUT_DIM = 32, 16
    HIDDEN_DIMS = [64, 64, 64]

    key = jax.random.PRNGKey(0)
    kx, ky, kp = jax.random.split(key, 3)
    params = init_params(kp, INPUT_DIM, HIDDEN_DIMS, OUTPUT_DIM)

    # B=16: single-tile fast path.  B=300: exercises padding/mask + the 2-tile
    # split (both v7x TensorCores get work).
    for B in (16, 300):
        x = jax.random.normal(jax.random.fold_in(kx, B), (B, INPUT_DIM), jnp.float32)
        y = jax.random.normal(jax.random.fold_in(ky, B), (B, OUTPUT_DIM), jnp.float32)

        loss = jax.block_until_ready(mlp_mse_loss(x, y, params))
        ref_bf16 = jax.block_until_ready(reference_loss_bf16(x, y, params))
        ref_f32 = jax.block_until_ready(reference_loss_f32(x, y, params))

        # Tight check vs. the bf16-matched reference; loose vs. pure f32
        # (bf16 MXU operands make an exact 1e-5 f32 match impossible).
        assert jnp.allclose(loss, ref_bf16, rtol=1e-3, atol=1e-3), (B, loss, ref_bf16)
        assert jnp.allclose(loss, ref_f32, rtol=3e-2, atol=3e-2), (B, loss, ref_f32)

    # TODO(synk): the reference's Dropout is constructed but never applied in
    # forward() (dead positional arg to nn.Linear), so it is intentionally
    # omitted; the smooth_l1 loss option and the RL rollout helpers are
    # host-side / config branches, not kernel work.
    print("KERNEL_OK")
</pallas_src>

<mosaic_0001>
module attributes {stable_mosaic.version = 11 : i64} {
  func.func @_mlp_mse_kernel(%arg0: i32, %arg1: memref<16x32xbf16, #tpu.memory_space<vmem>>, %arg2: memref<16x16xf32, #tpu.memory_space<vmem>>, %arg3: memref<32x64xbf16, #tpu.memory_space<vmem>>, %arg4: memref<1x64xf32, #tpu.memory_space<vmem>>, %arg5: memref<64x64xbf16, #tpu.memory_space<vmem>>, %arg6: memref<1x64xf32, #tpu.memory_space<vmem>>, %arg7: memref<64x64xbf16, #tpu.memory_space<vmem>>, %arg8: memref<1x64xf32, #tpu.memory_space<vmem>>, %arg9: memref<64x16xbf16, #tpu.memory_space<vmem>>, %arg10: memref<1x16xf32, #tpu.memory_space<vmem>>, %arg11: memref<8x128xf32, #tpu.memory_space<vmem>>) attributes {dimension_semantics = [#tpu.dimension_semantics<parallel>], iteration_bounds = array<i64: 1>, scalar_prefetch = 0 : i64, scratch_operands = 0 : i64, tpu.core_type = #tpu.core_type<tc>, window_params = [{transform_indices = @transform_0, window_bounds = array<i64: 16, 32>}, {transform_indices = @transform_1, window_bounds = array<i64: 16, 16>}, {pipeline_mode = #tpu.pipeline_mode<synchronous>, transform_indices = @transform_2, window_bounds = array<i64: 32, 64>}, {pipeline_mode = #tpu.pipeline_mode<synchronous>, transform_indices = @transform_3, window_bounds = array<i64: 1, 64>}, {pipeline_mode = #tpu.pipeline_mode<synchronous>, transform_indices = @transform_4, window_bounds = array<i64: 64, 64>}, {pipeline_mode = #tpu.pipeline_mode<synchronous>, transform_indices = @transform_5, window_bounds = array<i64: 1, 64>}, {pipeline_mode = #tpu.pipeline_mode<synchronous>, transform_indices = @transform_6, window_bounds = array<i64: 64, 64>}, {pipeline_mode = #tpu.pipeline_mode<synchronous>, transform_indices = @transform_7, window_bounds = array<i64: 1, 64>}, {pipeline_mode = #tpu.pipeline_mode<synchronous>, transform_indices = @transform_8, window_bounds = array<i64: 64, 16>}, {pipeline_mode = #tpu.pipeline_mode<synchronous>, transform_indices = @transform_9, window_bounds = array<i64: 1, 16>}, {transform_indices = @transform_10, window_bounds = array<i64: 8, 128>}]} {
    %c0 = arith.constant 0 : index
    %c0_0 = arith.constant 0 : index
    %0 = vector.load %arg1[%c0, %c0_0] : memref<16x32xbf16, #tpu.memory_space<vmem>>, vector<16x32xbf16>
    %c0_1 = arith.constant 0 : index
    %c0_2 = arith.constant 0 : index
    %1 = vector.load %arg3[%c0_1, %c0_2] : memref<32x64xbf16, #tpu.memory_space<vmem>>, vector<32x64xbf16>
    %cst = arith.constant dense<0.000000e+00> : vector<16x64xf32>
    %2 = tpu.matmul %0, %1, %cst {dimension_numbers = #tpu.dot_dimension_numbers<[1], [0], [0], [1], [0, 0, 1, 1], [], []>} : vector<16x32xbf16>, vector<32x64xbf16>, vector<16x64xf32> -> vector<16x64xf32>
    %c0_3 = arith.constant 0 : index
    %c0_4 = arith.constant 0 : index
    %3 = vector.load %arg4[%c0_3, %c0_4] : memref<1x64xf32, #tpu.memory_space<vmem>>, vector<1x64xf32>
    %4 = vector.broadcast %3 : vector<1x64xf32> to vector<16x64xf32>
    %5 = arith.addf %2, %4 : vector<16x64xf32>
    %cst_5 = arith.constant 0.000000e+00 : f32
    %6 = vector.broadcast %cst_5 : f32 to vector<16x64xf32>
    %7 = arith.maximumf %5, %6 : vector<16x64xf32>
    %8 = arith.truncf %7 : vector<16x64xf32> to vector<16x64xbf16>
    %c0_6 = arith.constant 0 : index
    %c0_7 = arith.constant 0 : index
    %9 = vector.load %arg5[%c0_6, %c0_7] : memref<64x64xbf16, #tpu.memory_space<vmem>>, vector<64x64xbf16>
    %cst_8 = arith.constant dense<0.000000e+00> : vector<16x64xf32>
    %10 = tpu.matmul %8, %9, %cst_8 {dimension_numbers = #tpu.dot_dimension_numbers<[1], [0], [0], [1], [0, 0, 1, 1], [], []>} : vector<16x64xbf16>, vector<64x64xbf16>, vector<16x64xf32> -> vector<16x64xf32>
    %c0_9 = arith.constant 0 : index
    %c0_10 = arith.constant 0 : index
    %11 = vector.load %arg6[%c0_9, %c0_10] : memref<1x64xf32, #tpu.memory_space<vmem>>, vector<1x64xf32>
    %12 = vector.broadcast %11 : vector<1x64xf32> to vector<16x64xf32>
    %13 = arith.addf %10, %12 : vector<16x64xf32>
    %cst_11 = arith.constant 0.000000e+00 : f32
    %14 = vector.broadcast %cst_11 : f32 to vector<16x64xf32>
    %15 = arith.maximumf %13, %14 : vector<16x64xf32>
    %16 = arith.truncf %15 : vector<16x64xf32> to vector<16x64xbf16>
    %c0_12 = arith.constant 0 : index
    %c0_13 = arith.constant 0 : index
    %17 = vector.load %arg7[%c0_12, %c0_13] : memref<64x64xbf16, #tpu.memory_space<vmem>>, vector<64x64xbf16>
    %cst_14 = arith.constant dense<0.000000e+00> : vector<16x64xf32>
    %18 = tpu.matmul %16, %17, %cst_14 {dimension_numbers = #tpu.dot_dimension_numbers<[1], [0], [0], [1], [0, 0, 1, 1], [], []>} : vector<16x64xbf16>, vector<64x64xbf16>, vector<16x64xf32> -> vector<16x64xf32>
    %c0_15 = arith.constant 0 : index
    %c0_16 = arith.constant 0 : index
    %19 = vector.load %arg8[%c0_15, %c0_16] : memref<1x64xf32, #tpu.memory_space<vmem>>, vector<1x64xf32>
    %20 = vector.broadcast %19 : vector<1x64xf32> to vector<16x64xf32>
    %21 = arith.addf %18, %20 : vector<16x64xf32>
    %cst_17 = arith.constant 0.000000e+00 : f32
    %22 = vector.broadcast %cst_17 : f32 to vector<16x64xf32>
    %23 = arith.maximumf %21, %22 : vector<16x64xf32>
    %24 = arith.truncf %23 : vector<16x64xf32> to vector<16x64xbf16>
    %c0_18 = arith.constant 0 : index
    %c0_19 = arith.constant 0 : index
    %25 = vector.load %arg9[%c0_18, %c0_19] : memref<64x16xbf16, #tpu.memory_space<vmem>>, vector<64x16xbf16>
    %cst_20 = arith.constant dense<0.000000e+00> : vector<16x16xf32>
    %26 = tpu.matmul %24, %25, %cst_20 {dimension_numbers = #tpu.dot_dimension_numbers<[1], [0], [0], [1], [0, 0, 1, 1], [], []>} : vector<16x64xbf16>, vector<64x16xbf16>, vector<16x16xf32> -> vector<16x16xf32>
    %c0_21 = arith.constant 0 : index
    %c0_22 = arith.constant 0 : index
    %27 = vector.load %arg10[%c0_21, %c0_22] : memref<1x16xf32, #tpu.memory_space<vmem>>, vector<1x16xf32>
    %28 = vector.broadcast %27 : vector<1x16xf32> to vector<16x16xf32>
    %29 = arith.addf %26, %28 : vector<16x16xf32>
    %c0_23 = arith.constant 0 : index
    %c0_24 = arith.constant 0 : index
    %30 = vector.load %arg2[%c0_23, %c0_24] : memref<16x16xf32, #tpu.memory_space<vmem>>, vector<16x16xf32>
    %31 = arith.subf %29, %30 : vector<16x16xf32>
    %32 = arith.mulf %31, %31 : vector<16x16xf32>
    %cst_25 = arith.constant dense<0.000000e+00> : vector<16xf32>
    %33 = vector.multi_reduction <add>, %32, %cst_25 [0] : vector<16x16xf32> to vector<16xf32>
    %34 = vector.shape_cast %33 : vector<16xf32> to vector<1x16xf32>
    %cst_26 = arith.constant 0.000000e+00 : f32
    %35 = vector.broadcast %cst_26 : f32 to vector<1x112xf32>
    %36 = tpu.concatenate %34, %35 in 1 : vector<1x16xf32>, vector<1x112xf32> -> vector<1x128xf32>
    %37 = vector.shape_cast %36 : vector<1x128xf32> to vector<1x128xf32>
    %38 = vector.broadcast %37 : vector<1x128xf32> to vector<8x128xf32>
    %c0_27 = arith.constant 0 : index
    %c0_28 = arith.constant 0 : index
    %39 = vector.load %arg11[%c0_27, %c0_28] : memref<8x128xf32, #tpu.memory_space<vmem>>, vector<8x128xf32>
    tpu.vector_store %arg11[%c0_27, %c0_28], %38 {strides = array<i32>} : memref<8x128xf32, #tpu.memory_space<vmem>>, vector<8x128xf32>,
    return
  }
  func.func @transform_0(%arg0: i32) -> (i32, i32) {
    %c0_i32 = arith.constant 0 : i32
    %c0_i32_0 = arith.constant 0 : i32
    return %arg0, %c0_i32 : i32, i32
  }
  func.func @transform_1(%arg0: i32) -> (i32, i32) {
    %c0_i32 = arith.constant 0 : i32
    %c0_i32_0 = arith.constant 0 : i32
    return %arg0, %c0_i32 : i32, i32
  }
  func.func @transform_2(%arg0: i32) -> (i32, i32) {
    %c0_i32 = arith.constant 0 : i32
    %c0_i32_0 = arith.constant 0 : i32
    %c0_i32_1 = arith.constant 0 : i32
    return %c0_i32, %c0_i32_0 : i32, i32
  }
  func.func @transform_3(%arg0: i32) -> (i32, i32) {
    %c0_i32 = arith.constant 0 : i32
    %c0_i32_0 = arith.constant 0 : i32
    %c0_i32_1 = arith.constant 0 : i32
    return %c0_i32, %c0_i32_0 : i32, i32
  }
  func.func @transform_4(%arg0: i32) -> (i32, i32) {
    %c0_i32 = arith.constant 0 : i32
    %c0_i32_0 = arith.constant 0 : i32
    %c0_i32_1 = arith.constant 0 : i32
    return %c0_i32, %c0_i32_0 : i32, i32
  }
  func.func @transform_5(%arg0: i32) -> (i32, i32) {
    %c0_i32 = arith.constant 0 : i32
    %c0_i32_0 = arith.constant 0 : i32
    %c0_i32_1 = arith.constant 0 : i32
    return %c0_i32, %c0_i32_0 : i32, i32
  }
  func.func @transform_6(%arg0: i32) -> (i32, i32) {
    %c0_i32 = arith.constant 0 : i32
    %c0_i32_0 = arith.constant 0 : i32
    %c0_i32_1 = arith.constant 0 : i32
    return %c0_i32, %c0_i32_0 : i32, i32
  }
  func.func @transform_7(%arg0: i32) -> (i32, i32) {
    %c0_i32 = arith.constant 0 : i32
    %c0_i32_0 = arith.constant 0 : i32
    %c0_i32_1 = arith.constant 0 : i32
    return %c0_i32, %c0_i32_0 : i32, i32
  }
  func.func @transform_8(%arg0: i32) -> (i32, i32) {
    %c0_i32 = arith.constant 0 : i32
    %c0_i32_0 = arith.constant 0 : i32
    %c0_i32_1 = arith.constant 0 : i32
    return %c0_i32, %c0_i32_0 : i32, i32
  }
  func.func @transform_9(%arg0: i32) -> (i32, i32) {
    %c0_i32 = arith.constant 0 : i32
    %c0_i32_0 = arith.constant 0 : i32
    %c0_i32_1 = arith.constant 0 : i32
    return %c0_i32, %c0_i32_0 : i32, i32
  }
  func.func @transform_10(%arg0: i32) -> (i32, i32) {
    %c0_i32 = arith.constant 0 : i32
    %c0_i32_0 = arith.constant 0 : i32
    return %arg0, %c0_i32 : i32, i32
  }
}

</mosaic_0001>

<llo_original>
// kernel: tpu_custom_call.1
$region0: #{tpu_custom_call.1}
  #allocation0 [shape = 'u32[]', space=smem, size = 0x4, offset = 0x4, fixed_abs, tag = 'smem constant byte address 0x4 - core index']
  #allocation1 [shape = 'u32[144,128]{1,0:T(1,128)}', space=vmem, size = 0x12000, scoped, tag = 'internal scratch']
  %s0 = inlined_call_operand.vmem [shape: bf16[16,32], index: 0, kind: input, shape index: {}]
  %s1 = inlined_call_operand.hbm [shape: f32[16,16], index: 1, kind: input, shape index: {}]
  %s2 = inlined_call_operand.hbm [shape: bf16[32,64], index: 2, kind: input, shape index: {}]
  %s3 = inlined_call_operand.vmem [shape: f32[1,64], index: 3, kind: input, shape index: {}]
  %s4 = inlined_call_operand.vmem [shape: bf16[64,64], index: 4, kind: input, shape index: {}]
  %s5 = inlined_call_operand.vmem [shape: f32[1,64], index: 5, kind: input, shape index: {}]
  %s6 = inlined_call_operand.hbm [shape: bf16[64,64], index: 6, kind: input, shape index: {}]
  %s7 = inlined_call_operand.vmem [shape: f32[1,64], index: 7, kind: input, shape index: {}]
  %s8 = inlined_call_operand.vmem [shape: bf16[64,16], index: 8, kind: input, shape index: {}]
  %s9 = inlined_call_operand.vmem [shape: f32[1,16], index: 9, kind: input, shape index: {}]
  %s10 = inlined_call_operand.hbm [shape: f32[8,128], index: 10, kind: output, shape index: {}]
  %s11 = sld [smem:[#allocation0]]
  $region62: #{tpu_custom_call.1} parent=0
    _
  %s13 = ssub.s32 1, %s11
  %s14 = scalar_select 0, %s13, %s11
  $region1: #{tpu_custom_call.1} parent=0
    #allocation2 [shape = 'u8[8192]{0}', space=vmem, size = 0x2000, scoped, tag = 'input window, operand 1, single buffered']
    #allocation3 [shape = 's32[1]{0}', space=sflag, size = 0x4, scoped, tag = 'scoped memory for tpu_custom_call.1']
    #allocation4 [shape = 's32[1]{0}', space=sflag, size = 0x4, scoped, tag = 'scoped memory for tpu_custom_call.1']
    #allocation5 [shape = 'u8[8192]{0}', space=vmem, size = 0x2000, scoped, tag = 'input window, operand 2, single buffered']
    #allocation6 [shape = 's32[1]{0}', space=sflag, size = 0x4, scoped, tag = 'scoped memory for tpu_custom_call.1']
    #allocation7 [shape = 'u8[16384]{0}', space=vmem, size = 0x4000, scoped, tag = 'input window, operand 6, single buffered']
    #allocation8 [shape = 'u8[4096]{0}', space=vmem, size = 0x1000, scoped, tag = 'output window, operand 0, single buffered']
    %15 = vsyncpa [#allocation3], 0
    %16 = vsyncpa [#allocation6], 0
    %17 = vsyncpa [#allocation4], 0
    // Predicated region
    $region2: #{tpu_custom_call.1} parent=1 // pred_check
      _
    $region3: #{tpu_custom_call.1} parent=1 // pred_check_branch
      %19 = sbr.rel (0) target = $region5
    $region4: #{tpu_custom_call.1} parent=1 // pred_region
      _
    $region5: #{tpu_custom_call.1} parent=1 // pred_fallthru
      _
    // Predicated region
    $region6: #{tpu_custom_call.1} parent=1 // pred_check
      _
    $region7: #{tpu_custom_call.1} parent=1 // pred_check_branch
      %21 = sbr.rel (0) target = $region9
    $region8: #{tpu_custom_call.1} parent=1 // pred_region
      %s23 = ssub.s32 256, 256
      %24 = vsyncadd [#allocation3], %s23
      %s25 = sshll.u32 [#allocation2], 4
      %s26 = int_to_ptr.vmem [resolvable:$true] %s25
      %31 = dma.hbm_to_vmem [thread:$0]  %s1, 256, %s26, [#allocation3], 128, 128, 8
    $region9: #{tpu_custom_call.1} parent=1 // pred_fallthru
      _
    // Predicated region
    $region10: #{tpu_custom_call.1} parent=1 // pred_check
      _
    $region11: #{tpu_custom_call.1} parent=1 // pred_check_branch
      %33 = sbr.rel (0) target = $region13
    $region12: #{tpu_custom_call.1} parent=1 // pred_region
      %s35 = ssub.s32 256, 256
      %36 = vsyncadd [#allocation6], %s35
      %s37 = sshll.u32 [#allocation5], 4
      %s38 = int_to_ptr.vmem [resolvable:$true] %s37
      %43 = dma.hbm_to_vmem [thread:$0]  %s2, 256, %s38, [#allocation6], 64, 64, 4
    $region13: #{tpu_custom_call.1} parent=1 // pred_fallthru
      _
    // Predicated region
    $region14: #{tpu_custom_call.1} parent=1 // pred_check
      _
    $region15: #{tpu_custom_call.1} parent=1 // pred_check_branch
      %45 = sbr.rel (0) target = $region17
    $region16: #{tpu_custom_call.1} parent=1 // pred_region
      _
    $region17: #{tpu_custom_call.1} parent=1 // pred_fallthru
      _
    // Predicated region
    $region18: #{tpu_custom_call.1} parent=1 // pred_check
      _
    $region19: #{tpu_custom_call.1} parent=1 // pred_check_branch
      %47 = sbr.rel (0) target = $region21
    $region20: #{tpu_custom_call.1} parent=1 // pred_region
      _
    $region21: #{tpu_custom_call.1} parent=1 // pred_fallthru
      _
    // Predicated region
    $region22: #{tpu_custom_call.1} parent=1 // pred_check
      _
    $region23: #{tpu_custom_call.1} parent=1 // pred_check_branch
      %49 = sbr.rel (0) target = $region25
    $region24: #{tpu_custom_call.1} parent=1 // pred_region
      _
    $region25: #{tpu_custom_call.1} parent=1 // pred_fallthru
      _
    // Predicated region
    $region26: #{tpu_custom_call.1} parent=1 // pred_check
      _
    $region27: #{tpu_custom_call.1} parent=1 // pred_check_branch
      %51 = sbr.rel (0) target = $region29
    $region28: #{tpu_custom_call.1} parent=1 // pred_region
      %s53 = ssub.s32 512, 512
      %54 = vsyncadd [#allocation6], %s53
      %s55 = sshll.u32 [#allocation7], 4
      %s56 = int_to_ptr.vmem [resolvable:$true] %s55
      %61 = dma.hbm_to_vmem [thread:$0]  %s6, 512, %s56, [#allocation6], 64, 64, 4
    $region29: #{tpu_custom_call.1} parent=1 // pred_fallthru
      _
    // Predicated region
    $region30: #{tpu_custom_call.1} parent=1 // pred_check
      _
    $region31: #{tpu_custom_call.1} parent=1 // pred_check_branch
      %63 = sbr.rel (0) target = $region33
    $region32: #{tpu_custom_call.1} parent=1 // pred_region
      _
    $region33: #{tpu_custom_call.1} parent=1 // pred_fallthru
      _
    // Predicated region
    $region34: #{tpu_custom_call.1} parent=1 // pred_check
      _
    $region35: #{tpu_custom_call.1} parent=1 // pred_check_branch
      %65 = sbr.rel (0) target = $region37
    $region36: #{tpu_custom_call.1} parent=1 // pred_region
      _
    $region37: #{tpu_custom_call.1} parent=1 // pred_fallthru
      _
    // Predicated region
    $region38: #{tpu_custom_call.1} parent=1 // pred_check
      _
    $region39: #{tpu_custom_call.1} parent=1 // pred_check_branch
      %67 = sbr.rel (0) target = $region41
    $region40: #{tpu_custom_call.1} parent=1 // pred_region
      _
    $region41: #{tpu_custom_call.1} parent=1 // pred_fallthru
      _
    // Predicated region
    $region42: #{tpu_custom_call.1} parent=1 // pred_check
      _
    $region43: #{tpu_custom_call.1} parent=1 // pred_check_branch
      %69 = sbr.rel (0) target = $region45
    $region44: #{tpu_custom_call.1} parent=1 // pred_region
      %70 = dma.done [#allocation3], 256
    $region45: #{tpu_custom_call.1} parent=1 // pred_fallthru
      _
    // Predicated region
    $region46: #{tpu_custom_call.1} parent=1 // pred_check
      _
    $region47: #{tpu_custom_call.1} parent=1 // pred_check_branch
      %72 = sbr.rel (0) target = $region49
    $region48: #{tpu_custom_call.1} parent=1 // pred_region
      %73 = dma.done [#allocation6], 256
    $region49: #{tpu_custom_call.1} parent=1 // pred_fallthru
      _
    // Predicated region
    $region50: #{tpu_custom_call.1} parent=1 // pred_check
      _
    $region51: #{tpu_custom_call.1} parent=1 // pred_check_branch
      %75 = sbr.rel (0) target = $region53
    $region52: #{tpu_custom_call.1} parent=1 // pred_region
      %76 = dma.done [#allocation6], 512
    $region53: #{tpu_custom_call.1} parent=1 // pred_fallthru
      _
    %v78 = vld [vmem:[%s0] sm:$0xf]
    %v79 = vld [vmem:[%s0 + $0x4] sm:$0xf]
    %v80 = vld [vmem:[#allocation5] sm:$0xf]
    %v81 = vld [vmem:[#allocation5 + $0x4] sm:$0xf]
    %v82 = vld [vmem:[#allocation5 + $0x8] sm:$0xf]
    %v83 = vld [vmem:[#allocation5 + $0xc] sm:$0xf]
    %v84 = vld [vmem:[%s3] sm:$0x1]
    %v86 = vlaneseq
    %v87 = vshrl.u32 %v86, 7
    %v88 = vsub.s32 0, %v87
    %v89 = vrot.slane %v84, %v88
    %v93 = vunpack.c.l.b16 %v78
    %v94 = vunpack.c.l.b16 %v79
    %v95 = vpack.c.b16 %v94, %v93
    %v100 = vunpack.c.l.b16 %v80
    %v101 = vunpack.c.l.b16 %v81
    %v102 = vunpack.c.l.b16 %v82
    %v103 = vunpack.c.l.b16 %v83
    %v104 = vpack.c.b16 %v101, %v100
    %v105 = vpack.c.b16 %v103, %v102
    %vm108 = vcmask 261120
    %v110 = vsel %vm108, %v95, 0
    %112 = vmatprep.subr.bf16.mxu0 0
    %113 = vmatpush1.bf16.msra.mxu0 0
    %114 = vmatprep.subr.bf16.mxu0 0
    %115 = vmatpush1.bf16.msra.mxu0 0
    %116 = vmatprep.subr.bf16.mxu0 0
    %117 = vmatpush1.bf16.msra.mxu0 0
    %118 = vmatprep.subr.bf16.mxu0 0
    %119 = vmatpush1.bf16.msra.mxu0 0
    %120 = vmatprep.subr.bf16.mxu0 0
    %121 = vmatpush1.bf16.msra.mxu0 0
    %122 = vmatprep.subr.bf16.mxu0 0
    %123 = vmatpush1.bf16.msra.mxu0 0
    %124 = vmatprep.subr.bf16.mxu0 0
    %125 = vmatpush1.bf16.msra.mxu0 %v105
    %126 = vmatprep.subr.bf16.mxu0 0
    %127 = vmatpush1.bf16.msra.mxu0 %v104
    %128 = vmatprep.subr.bf16.mxu0 0
    %129 = vmatpush2.bf16.msra.mxu0 0
    %130 = vmatprep.subr.bf16.mxu0 0
    %131 = vmatpush2.bf16.msra.mxu0 0
    %132 = vmatprep.subr.bf16.mxu0 0
    %133 = vmatpush2.bf16.msra.mxu0 0
    %134 = vmatprep.subr.bf16.mxu0 0
    %135 = vmatpush2.bf16.msra.mxu0 0
    %136 = vmatprep.subr.bf16.mxu0 0
    %137 = vmatpush2.bf16.msra.mxu0 0
    %138 = vmatprep.subr.bf16.mxu0 0
    %139 = vmatpush2.bf16.msra.mxu0 0
    %140 = vmatprep.subr.bf16.mxu0 0
    %141 = vmatpush2.bf16.msra.mxu0 0
    %142 = vmatprep.subr.bf16.mxu0 0
    %143 = vmatpush2.bf16.msra.mxu0 0
    %144 = vmatprep.mubr.bf16.mxu0 0
    %145 = vmatmul.mubr.bf16.gmra.mxu0 %v110
    %v146 = vpop.f32.mrf.mxu0
    %v147 = vadd.f32 %v89, %v146
    %v148 = vpop.f32.mrf.mxu0
    %v149 = vpop.f32.mrf.mxu0
    %v150 = vadd.f32 %v89, %v149
    %v151 = vpop.f32.mrf.mxu0
    %152 = vdwg.mxu0
    %v153 = vmax.f32 %v147, 0.0
    %v154 = vmax.f32 %v150, 0.0
    %v155 = vpack.c.bf16 %v154, %v153
    %v156 = vld [vmem:[%s4] sm:$0xf]
    %v157 = vld [vmem:[%s4 + $0x4] sm:$0xf]
    %v158 = vld [vmem:[%s4 + $0x8] sm:$0xf]
    %v159 = vld [vmem:[%s4 + $0xc] sm:$0xf]
    %v160 = vld [vmem:[%s4 + $0x10] sm:$0xf]
    %v161 = vld [vmem:[%s4 + $0x14] sm:$0xf]
    %v162 = vld [vmem:[%s4 + $0x18] sm:$0xf]
    %v163 = vld [vmem:[%s4 + $0x1c] sm:$0xf]
    %v164 = vld [vmem:[%s5] sm:$0x1]
    %v166 = vlaneseq
    %v167 = vshrl.u32 %v166, 7
    %v168 = vsub.s32 0, %v167
    %v169 = vrot.slane %v164, %v168
    %v179 = vunpack.c.l.b16 %v156
    %v180 = vunpack.c.l.b16 %v157
    %v181 = vunpack.c.l.b16 %v158
    %v182 = vunpack.c.l.b16 %v159
    %v183 = vunpack.c.l.b16 %v160
    %v184 = vunpack.c.l.b16 %v161
    %v185 = vunpack.c.l.b16 %v162
    %v186 = vunpack.c.l.b16 %v163
    %v187 = vpack.c.b16 %v180, %v179
    %v188 = vpack.c.b16 %v182, %v181
    %v189 = vpack.c.b16 %v184, %v183
    %v190 = vpack.c.b16 %v186, %v185
    %vm195 = vcmask 523264
    %v197 = vsel %vm195, %v155, 0
    %199 = vmatprep.subr.bf16.mxu0 0
    %200 = vmatpush1.bf16.msra.mxu0 0
    %201 = vmatprep.subr.bf16.mxu0 0
    %202 = vmatpush1.bf16.msra.mxu0 0
    %203 = vmatprep.subr.bf16.mxu0 0
    %204 = vmatpush1.bf16.msra.mxu0 0
    %205 = vmatprep.subr.bf16.mxu0 0
    %206 = vmatpush1.bf16.msra.mxu0 0
    %207 = vmatprep.subr.bf16.mxu0 0
    %208 = vmatpush1.bf16.msra.mxu0 %v190
    %209 = vmatprep.subr.bf16.mxu0 0
    %210 = vmatpush1.bf16.msra.mxu0 %v189
    %211 = vmatprep.subr.bf16.mxu0 0
    %212 = vmatpush1.bf16.msra.mxu0 %v188
    %213 = vmatprep.subr.bf16.mxu0 0
    %214 = vmatpush1.bf16.msra.mxu0 %v187
    %215 = vmatprep.subr.bf16.mxu0 0
    %216 = vmatpush2.bf16.msra.mxu0 0
    %217 = vmatprep.subr.bf16.mxu0 0
    %218 = vmatpush2.bf16.msra.mxu0 0
    %219 = vmatprep.subr.bf16.mxu0 0
    %220 = vmatpush2.bf16.msra.mxu0 0
    %221 = vmatprep.subr.bf16.mxu0 0
    %222 = vmatpush2.bf16.msra.mxu0 0
    %223 = vmatprep.subr.bf16.mxu0 0
    %224 = vmatpush2.bf16.msra.mxu0 0
    %225 = vmatprep.subr.bf16.mxu0 0
    %226 = vmatpush2.bf16.msra.mxu0 0
    %227 = vmatprep.subr.bf16.mxu0 0
    %228 = vmatpush2.bf16.msra.mxu0 0
    %229 = vmatprep.subr.bf16.mxu0 0
    %230 = vmatpush2.bf16.msra.mxu0 0
    %231 = vmatprep.mubr.bf16.mxu0 0
    %232 = vmatmul.mubr.bf16.gmra.mxu0 %v197
    %v233 = vpop.f32.mrf.mxu0
    %v234 = vadd.f32 %v169, %v233
    %v235 = vpop.f32.mrf.mxu0
    %v236 = vpop.f32.mrf.mxu0
    %v237 = vadd.f32 %v169, %v236
    %v238 = vpop.f32.mrf.mxu0
    %239 = vdwg.mxu0
    %v240 = vmax.f32 %v234, 0.0
    %v241 = vmax.f32 %v237, 0.0
    %v242 = vpack.c.bf16 %v241, %v240
    %v243 = vld [vmem:[#allocation7] sm:$0xf]
    %v244 = vld [vmem:[#allocation7 + $0x4] sm:$0xf]
    %v245 = vld [vmem:[#allocation7 + $0x8] sm:$0xf]
    %v246 = vld [vmem:[#allocation7 + $0xc] sm:$0xf]
    %v247 = vld [vmem:[#allocation7 + $0x10] sm:$0xf]
    %v248 = vld [vmem:[#allocation7 + $0x14] sm:$0xf]
    %v249 = vld [vmem:[#allocation7 + $0x18] sm:$0xf]
    %v250 = vld [vmem:[#allocation7 + $0x1c] sm:$0xf]
    %v251 = vld [vmem:[%s7] sm:$0x1]
    %v253 = vlaneseq
    %v254 = vshrl.u32 %v253, 7
    %v255 = vsub.s32 0, %v254
    %v256 = vrot.slane %v251, %v255
    %v266 = vunpack.c.l.b16 %v243
    %v267 = vunpack.c.l.b16 %v244
    %v268 = vunpack.c.l.b16 %v245
    %v269 = vunpack.c.l.b16 %v246
    %v270 = vunpack.c.l.b16 %v247
    %v271 = vunpack.c.l.b16 %v248
    %v272 = vunpack.c.l.b16 %v249
    %v273 = vunpack.c.l.b16 %v250
    %v274 = vpack.c.b16 %v267, %v266
    %v275 = vpack.c.b16 %v269, %v268
    %v276 = vpack.c.b16 %v271, %v270
    %v277 = vpack.c.b16 %v273, %v272
    %v283 = vsel %vm195, %v242, 0
    %285 = vmatprep.subr.bf16.mxu0 0
    %286 = vmatpush1.bf16.msra.mxu0 0
    %287 = vmatprep.subr.bf16.mxu0 0
    %288 = vmatpush1.bf16.msra.mxu0 0
    %289 = vmatprep.subr.bf16.mxu0 0
    %290 = vmatpush1.bf16.msra.mxu0 0
    %291 = vmatprep.subr.bf16.mxu0 0
    %292 = vmatpush1.bf16.msra.mxu0 0
    %293 = vmatprep.subr.bf16.mxu0 0
    %294 = vmatpush1.bf16.msra.mxu0 %v277
    %295 = vmatprep.subr.bf16.mxu0 0
    %296 = vmatpush1.bf16.msra.mxu0 %v276
    %297 = vmatprep.subr.bf16.mxu0 0
    %298 = vmatpush1.bf16.msra.mxu0 %v275
    %299 = vmatprep.subr.bf16.mxu0 0
    %300 = vmatpush1.bf16.msra.mxu0 %v274
    %301 = vmatprep.subr.bf16.mxu0 0
    %302 = vmatpush2.bf16.msra.mxu0 0
    %303 = vmatprep.subr.bf16.mxu0 0
    %304 = vmatpush2.bf16.msra.mxu0 0
    %305 = vmatprep.subr.bf16.mxu0 0
    %306 = vmatpush2.bf16.msra.mxu0 0
    %307 = vmatprep.subr.bf16.mxu0 0
    %308 = vmatpush2.bf16.msra.mxu0 0
    %309 = vmatprep.subr.bf16.mxu0 0
    %310 = vmatpush2.bf16.msra.mxu0 0
    %311 = vmatprep.subr.bf16.mxu0 0
    %312 = vmatpush2.bf16.msra.mxu0 0
    %313 = vmatprep.subr.bf16.mxu0 0
    %314 = vmatpush2.bf16.msra.mxu0 0
    %315 = vmatprep.subr.bf16.mxu0 0
    %316 = vmatpush2.bf16.msra.mxu0 0
    %317 = vmatprep.mubr.bf16.mxu0 0
    %318 = vmatmul.mubr.bf16.gmra.mxu0 %v283
    %v319 = vpop.f32.mrf.mxu0
    %v320 = vadd.f32 %v256, %v319
    %v321 = vpop.f32.mrf.mxu0
    %v322 = vpop.f32.mrf.mxu0
    %v323 = vadd.f32 %v256, %v322
    %v324 = vpop.f32.mrf.mxu0
    %325 = vdwg.mxu0
    %v326 = vmax.f32 %v320, 0.0
    %v327 = vmax.f32 %v323, 0.0
    %v328 = vpack.c.bf16 %v327, %v326
    %v329 = vld [vmem:[%s8] sm:$0xf]
    %v330 = vld [vmem:[%s8 + $0x4] sm:$0xf]
    %v331 = vld [vmem:[%s8 + $0x8] sm:$0xf]
    %v332 = vld [vmem:[%s8 + $0xc] sm:$0xf]
    %v333 = vld [vmem:[%s8 + $0x10] sm:$0xf]
    %v334 = vld [vmem:[%s8 + $0x14] sm:$0xf]
    %v335 = vld [vmem:[%s8 + $0x18] sm:$0xf]
    %v336 = vld [vmem:[%s8 + $0x1c] sm:$0xf]
    %v337 = vld [vmem:[%s9] sm:$0x1]
    %v339 = vlaneseq
    %v340 = vshrl.u32 %v339, 7
    %v341 = vsub.s32 0, %v340
    %v342 = vrot.slane %v337, %v341
    %v352 = vunpack.c.l.b16 %v329
    %v353 = vunpack.c.l.b16 %v330
    %v354 = vunpack.c.l.b16 %v331
    %v355 = vunpack.c.l.b16 %v332
    %v356 = vunpack.c.l.b16 %v333
    %v357 = vunpack.c.l.b16 %v334
    %v358 = vunpack.c.l.b16 %v335
    %v359 = vunpack.c.l.b16 %v336
    %v360 = vpack.c.b16 %v353, %v352
    %v361 = vpack.c.b16 %v355, %v354
    %v362 = vpack.c.b16 %v357, %v356
    %v363 = vpack.c.b16 %v359, %v358
    %v369 = vsel %vm195, %v328, 0
    %371 = vmatprep.subr.bf16.mxu0 0
    %372 = vmatpush1.bf16.msra.mxu0 0
    %373 = vmatprep.subr.bf16.mxu0 0
    %374 = vmatpush1.bf16.msra.mxu0 0
    %375 = vmatprep.subr.bf16.mxu0 0
    %376 = vmatpush1.bf16.msra.mxu0 0
    %377 = vmatprep.subr.bf16.mxu0 0
    %378 = vmatpush1.bf16.msra.mxu0 0
    %379 = vmatprep.subr.bf16.mxu0 0
    %380 = vmatpush1.bf16.msra.mxu0 %v363
    %381 = vmatprep.subr.bf16.mxu0 0
    %382 = vmatpush1.bf16.msra.mxu0 %v362
    %383 = vmatprep.subr.bf16.mxu0 0
    %384 = vmatpush1.bf16.msra.mxu0 %v361
    %385 = vmatprep.subr.bf16.mxu0 0
    %386 = vmatpush1.bf16.msra.mxu0 %v360
    %387 = vmatprep.subr.bf16.mxu0 0
    %388 = vmatpush2.bf16.msra.mxu0 0
    %389 = vmatprep.subr.bf16.mxu0 0
    %390 = vmatpush2.bf16.msra.mxu0 0
    %391 = vmatprep.subr.bf16.mxu0 0
    %392 = vmatpush2.bf16.msra.mxu0 0
    %393 = vmatprep.subr.bf16.mxu0 0
    %394 = vmatpush2.bf16.msra.mxu0 0
    %395 = vmatprep.subr.bf16.mxu0 0
    %396 = vmatpush2.bf16.msra.mxu0 0
    %397 = vmatprep.subr.bf16.mxu0 0
    %398 = vmatpush2.bf16.msra.mxu0 0
    %399 = vmatprep.subr.bf16.mxu0 0
    %400 = vmatpush2.bf16.msra.mxu0 0
    %401 = vmatprep.subr.bf16.mxu0 0
    %402 = vmatpush2.bf16.msra.mxu0 0
    %403 = vmatprep.mubr.bf16.mxu0 0
    %404 = vmatmul.mubr.bf16.gmra.mxu0 %v369
    %v405 = vpop.f32.mrf.mxu0
    %v406 = vadd.f32 %v342, %v405
    %v407 = vpop.f32.mrf.mxu0
    %v408 = vpop.f32.mrf.mxu0
    %v409 = vadd.f32 %v342, %v408
    %v410 = vpop.f32.mrf.mxu0
    %411 = vdwg.mxu0
    %v412 = vld [vmem:[#allocation2] sm:$0xff]
    %v413 = vld [vmem:[#allocation2 + $0x8] sm:$0xff]
    %v414 = vsub.f32 %v406, %v412
    %v415 = vsub.f32 %v409, %v413
    %v416 = vmul.f32 %v414, %v414
    %v417 = vmul.f32 %v415, %v415
    %vm418 = vcmask 130048
    %v419 = vsel %vm418, %v416, 0.0
    %v420 = vsel %vm418, %v417, 0.0
    %v421 = vadd.f32 %v419, %v420
    %v422 = vrot.slane %v421, 4
    %v423 = vadd.f32 %v421, %v422
    %v424 = vrot.slane %v423, 2
    %v425 = vadd.f32 %v423, %v424
    %v426 = vrot.slane %v425, 1
    %v427 = vadd.f32 %v425, %v426
    %v428 = vsel %vm418, %v427, 0.0
    %v429 = vlaneseq
    %v430 = vshrl.u32 %v429, 7
    %v431 = vsub.s32 0, %v430
    %v432 = vrot.slane %v428, %v431
    %433 = vst [vmem:[#allocation8] sm:$0xff] %v432
    // Predicated region
    $region54: #{tpu_custom_call.1} parent=1 // pred_check
      _
    $region55: #{tpu_custom_call.1} parent=1 // pred_check_branch
      %435 = sbr.rel (0) target = $region57
    $region56: #{tpu_custom_call.1} parent=1 // pred_region
      %s437 = ssub.s32 128, 128
      %438 = vsyncadd [#allocation4], %s437
      %s440 = sshll.u32 [#allocation8], 4
      %s441 = int_to_ptr.vmem [resolvable:$true] %s440
      %443 = dma.vmem_to_hbm [thread:$0]  %s441, 128, %s10, [#allocation4]
    $region57: #{tpu_custom_call.1} parent=1 // pred_fallthru
      _
    // Predicated region
    $region58: #{tpu_custom_call.1} parent=1 // pred_check
      _
    $region59: #{tpu_custom_call.1} parent=1 // pred_check_branch
      %445 = sbr.rel (0) target = $region61
    $region60: #{tpu_custom_call.1} parent=1 // pred_region
      %446 = dma.done [#allocation4], 128
    $region61: #{tpu_custom_call.1} parent=1 // pred_fallthru
      _
    %447 = vsyncpa [#allocation3], 1
    %448 = vsyncpa [#allocation6], 1
    %449 = vsyncpa [#allocation4], 1

</llo_original>
